<compile_context>
chip_gen: v7x
topology: tpu7x:2x2x1
jax: 0.10.0
libtpu: 0.0.40
codegen_flags: <defaults>
</compile_context>

<pallas_src>
import jax
import jax.numpy as jnp
from jax.experimental import pallas as pl
from jax.experimental.pallas import tpu as pltpu


def news_encoder_kernel(x_ref, w1_ref, b1_ref, w2_ref, b2_ref, o_ref):
    # x_ref block: (TB, S, D) token embeddings for TB batch rows.
    x = x_ref[...]                                    # (TB, S, D) f32
    pooled = jnp.mean(x, axis=1)                      # (TB, D)  == torch .mean(dim=1)

    # fc1 -> ReLU  (MXU matmul, f32 accumulate; bias broadcast once)
    h1 = jnp.dot(pooled, w1_ref[...], preferred_element_type=jnp.float32) + b1_ref[...]
    h1 = jnp.maximum(h1, 0.0)                         # ReLU on the VPU

    # fc2
    out = jnp.dot(h1, w2_ref[...], preferred_element_type=jnp.float32) + b2_ref[...]
    o_ref[...] = out.astype(o_ref.dtype)              # (TB, Hd) dense store


def news_encoder(token_ids, emb_table, w1, b1, w2, b2, *, tb=8):
    """Full NewsEncoder forward. token_ids: (B, S) int32."""
    # TODO(synk): the nn.Embedding row gather is data-dependent; it is done here
    # with jnp.take (XLA gather). An in-kernel version would need manual per-row
    # DMA (paged-attention style) which is not worth it at these shapes.
    x_emb = jnp.take(emb_table, token_ids, axis=0).astype(jnp.float32)   # (B, S, D)

    B, S, D = x_emb.shape
    Hd = w1.shape[1]

    # Pad the batch up to a multiple of the batch block so every grid step is
    # sublane-dense (tb is a multiple of 8).
    nb = pl.cdiv(B, tb)
    Bp = nb * tb
    if Bp != B:
        x_emb = jnp.pad(x_emb, ((0, Bp - B), (0, 0), (0, 0)))

    out = pl.pallas_call(
        news_encoder_kernel,
        out_shape=jax.ShapeDtypeStruct((Bp, Hd), jnp.float32),
        grid_spec=pltpu.PrefetchScalarGridSpec(
            num_scalar_prefetch=0,
            grid=(nb,),
            in_specs=[
                # (TB, S, D) batch-block of gathered embeddings per step.
                pl.BlockSpec((tb, S, D), lambda i: (i, 0, 0)),
                # Weights/biases: constant block index -> resident in VMEM.
                pl.BlockSpec((D, Hd), lambda i: (0, 0)),
                pl.BlockSpec((1, Hd), lambda i: (0, 0)),
                pl.BlockSpec((Hd, Hd), lambda i: (0, 0)),
                pl.BlockSpec((1, Hd), lambda i: (0, 0)),
            ],
            out_specs=pl.BlockSpec((tb, Hd), lambda i: (i, 0)),
        ),
        compiler_params=pltpu.CompilerParams(
            dimension_semantics=("parallel",),
        ),
    )(x_emb, w1, b1, w2, b2)
    return out[:B]


def news_encoder_ref(token_ids, emb_table, w1, b1, w2, b2):
    # Pure-JAX reference mirroring the PyTorch module.
    e = jnp.take(emb_table, token_ids, axis=0).mean(axis=1)   # (B, D)
    h1 = jax.nn.relu(e @ w1 + b1)                             # (B, Hd)
    return h1 @ w2 + b2                                       # (B, Hd)


if __name__ == "__main__":
    # Small, TPU-friendly shapes consistent with the module:
    # batch=16, seq=8, vocab=1000, embedding_dim=128, hidden_dim=128.
    B, S, V, D, Hd = 16, 8, 1000, 128, 128

    key = jax.random.PRNGKey(0)
    k_ids, k_emb, k_w1, k_b1, k_w2, k_b2 = jax.random.split(key, 6)

    token_ids = jax.random.randint(k_ids, (B, S), 0, V, dtype=jnp.int32)
    emb_table = jax.random.normal(k_emb, (V, D), dtype=jnp.float32) * 0.1

    # nn.Linear(D, Hd) and nn.Linear(Hd, Hd) parameters (biases kept as rows).
    w1 = jax.random.normal(k_w1, (D, Hd), dtype=jnp.float32) * 0.1
    b1 = jax.random.normal(k_b1, (1, Hd), dtype=jnp.float32) * 0.1
    w2 = jax.random.normal(k_w2, (Hd, Hd), dtype=jnp.float32) * 0.1
    b2 = jax.random.normal(k_b2, (1, Hd), dtype=jnp.float32) * 0.1

    out = news_encoder(token_ids, emb_table, w1, b1, w2, b2)
    out = jax.block_until_ready(out)

    ref = news_encoder_ref(token_ids, emb_table, w1, b1, w2, b2)
    assert out.shape == (B, Hd)
    assert jnp.allclose(out, ref, atol=1e-4, rtol=1e-4), "mismatch vs reference"

    print("KERNEL_OK")
</pallas_src>

<mosaic_0001>
module attributes {stable_mosaic.version = 11 : i64} {
  func.func @news_encoder_kernel(%arg0: i32, %arg1: memref<8x8x128xf32, #tpu.memory_space<vmem>>, %arg2: memref<128x128xf32, #tpu.memory_space<vmem>>, %arg3: memref<1x128xf32, #tpu.memory_space<vmem>>, %arg4: memref<128x128xf32, #tpu.memory_space<vmem>>, %arg5: memref<1x128xf32, #tpu.memory_space<vmem>>, %arg6: memref<8x128xf32, #tpu.memory_space<vmem>>) attributes {dimension_semantics = [#tpu.dimension_semantics<parallel>], iteration_bounds = array<i64: 2>, scalar_prefetch = 0 : i64, scratch_operands = 0 : i64, tpu.core_type = #tpu.core_type<tc>, window_params = [{transform_indices = @transform_0, window_bounds = array<i64: 8, 8, 128>}, {pipeline_mode = #tpu.pipeline_mode<synchronous>, transform_indices = @transform_1, window_bounds = array<i64: 128, 128>}, {pipeline_mode = #tpu.pipeline_mode<synchronous>, transform_indices = @transform_2, window_bounds = array<i64: 1, 128>}, {pipeline_mode = #tpu.pipeline_mode<synchronous>, transform_indices = @transform_3, window_bounds = array<i64: 128, 128>}, {pipeline_mode = #tpu.pipeline_mode<synchronous>, transform_indices = @transform_4, window_bounds = array<i64: 1, 128>}, {transform_indices = @transform_5, window_bounds = array<i64: 8, 128>}]} {
    %c0 = arith.constant 0 : index
    %c0_0 = arith.constant 0 : index
    %c0_1 = arith.constant 0 : index
    %0 = vector.load %arg1[%c0, %c0_0, %c0_1] : memref<8x8x128xf32, #tpu.memory_space<vmem>>, vector<8x8x128xf32>
    %cst = arith.constant dense<0.000000e+00> : vector<8x128xf32>
    %1 = vector.multi_reduction <add>, %0, %cst [1] : vector<8x8x128xf32> to vector<8x128xf32>
    %cst_2 = arith.constant 8.000000e+00 : f32
    %2 = vector.broadcast %cst_2 : f32 to vector<8x128xf32>
    %3 = arith.divf %1, %2 : vector<8x128xf32>
    %c0_3 = arith.constant 0 : index
    %c0_4 = arith.constant 0 : index
    %4 = vector.load %arg2[%c0_3, %c0_4] : memref<128x128xf32, #tpu.memory_space<vmem>>, vector<128x128xf32>
    %cst_5 = arith.constant dense<0.000000e+00> : vector<8x128xf32>
    %5 = tpu.matmul %3, %4, %cst_5 {dimension_numbers = #tpu.dot_dimension_numbers<[1], [0], [0], [1], [0, 0, 1, 1], [], []>} : vector<8x128xf32>, vector<128x128xf32>, vector<8x128xf32> -> vector<8x128xf32>
    %c0_6 = arith.constant 0 : index
    %c0_7 = arith.constant 0 : index
    %6 = vector.load %arg3[%c0_6, %c0_7] : memref<1x128xf32, #tpu.memory_space<vmem>>, vector<1x128xf32>
    %7 = vector.broadcast %6 : vector<1x128xf32> to vector<8x128xf32>
    %8 = arith.addf %5, %7 : vector<8x128xf32>
    %cst_8 = arith.constant 0.000000e+00 : f32
    %9 = vector.broadcast %cst_8 : f32 to vector<8x128xf32>
    %10 = arith.maximumf %8, %9 : vector<8x128xf32>
    %c0_9 = arith.constant 0 : index
    %c0_10 = arith.constant 0 : index
    %11 = vector.load %arg4[%c0_9, %c0_10] : memref<128x128xf32, #tpu.memory_space<vmem>>, vector<128x128xf32>
    %cst_11 = arith.constant dense<0.000000e+00> : vector<8x128xf32>
    %12 = tpu.matmul %10, %11, %cst_11 {dimension_numbers = #tpu.dot_dimension_numbers<[1], [0], [0], [1], [0, 0, 1, 1], [], []>} : vector<8x128xf32>, vector<128x128xf32>, vector<8x128xf32> -> vector<8x128xf32>
    %c0_12 = arith.constant 0 : index
    %c0_13 = arith.constant 0 : index
    %13 = vector.load %arg5[%c0_12, %c0_13] : memref<1x128xf32, #tpu.memory_space<vmem>>, vector<1x128xf32>
    %14 = vector.broadcast %13 : vector<1x128xf32> to vector<8x128xf32>
    %15 = arith.addf %12, %14 : vector<8x128xf32>
    %c0_14 = arith.constant 0 : index
    %c0_15 = arith.constant 0 : index
    %16 = vector.load %arg6[%c0_14, %c0_15] : memref<8x128xf32, #tpu.memory_space<vmem>>, vector<8x128xf32>
    tpu.vector_store %arg6[%c0_14, %c0_15], %15 {strides = array<i32>} : memref<8x128xf32, #tpu.memory_space<vmem>>, vector<8x128xf32>,
    return
  }
  func.func @transform_0(%arg0: i32) -> (i32, i32, i32) {
    %c0_i32 = arith.constant 0 : i32
    %c0_i32_0 = arith.constant 0 : i32
    %c0_i32_1 = arith.constant 0 : i32
    return %arg0, %c0_i32, %c0_i32_0 : i32, i32, i32
  }
  func.func @transform_1(%arg0: i32) -> (i32, i32) {
    %c0_i32 = arith.constant 0 : i32
    %c0_i32_0 = arith.constant 0 : i32
    %c0_i32_1 = arith.constant 0 : i32
    return %c0_i32, %c0_i32_0 : i32, i32
  }
  func.func @transform_2(%arg0: i32) -> (i32, i32) {
    %c0_i32 = arith.constant 0 : i32
    %c0_i32_0 = arith.constant 0 : i32
    %c0_i32_1 = arith.constant 0 : i32
    return %c0_i32, %c0_i32_0 : i32, i32
  }
  func.func @transform_3(%arg0: i32) -> (i32, i32) {
    %c0_i32 = arith.constant 0 : i32
    %c0_i32_0 = arith.constant 0 : i32
    %c0_i32_1 = arith.constant 0 : i32
    return %c0_i32, %c0_i32_0 : i32, i32
  }
  func.func @transform_4(%arg0: i32) -> (i32, i32) {
    %c0_i32 = arith.constant 0 : i32
    %c0_i32_0 = arith.constant 0 : i32
    %c0_i32_1 = arith.constant 0 : i32
    return %c0_i32, %c0_i32_0 : i32, i32
  }
  func.func @transform_5(%arg0: i32) -> (i32, i32) {
    %c0_i32 = arith.constant 0 : i32
    %c0_i32_0 = arith.constant 0 : i32
    return %arg0, %c0_i32 : i32, i32
  }
}

</mosaic_0001>

<llo_original>
// kernel: tpu_custom_call.1
$region0: #{tpu_custom_call.1}
  #allocation0 [shape = 'u32[]', space=smem, size = 0x4, offset = 0x4, fixed_abs, tag = 'smem constant byte address 0x4 - core index']
  #allocation1 [shape = 'u32[144,128]{1,0:T(1,128)}', space=vmem, size = 0x12000, scoped, tag = 'internal scratch']
  %s0 = inlined_call_operand.hbm [shape: f32[16,8,128], index: 0, kind: input, shape index: {}]
  %s1 = inlined_call_operand.hbm [shape: f32[128,128], index: 1, kind: input, shape index: {}]
  %s2 = inlined_call_operand.vmem [shape: f32[1,128], index: 2, kind: input, shape index: {}]
  %s3 = inlined_call_operand.hbm [shape: f32[128,128], index: 3, kind: input, shape index: {}]
  %s4 = inlined_call_operand.vmem [shape: f32[1,128], index: 4, kind: input, shape index: {}]
  %s5 = inlined_call_operand.hbm [shape: f32[16,128], index: 5, kind: output, shape index: {}]
  %s6 = sld [smem:[#allocation0]]
  $region65: #{tpu_custom_call.1} parent=0
    _
  %s8 = ssub.s32 1, %s6
  %s9 = scalar_select 0, %s8, %s6
  $region1: #{tpu_custom_call.1} parent=0
    #allocation2 [shape = 'u8[65536]{0}', space=vmem, size = 0x10000, scoped, tag = 'input window, operand 0']
    #allocation3 [shape = 's32[2]{0}', space=sflag, size = 0x8, scoped, tag = 'scoped memory for tpu_custom_call.1']
    #allocation4 [shape = 's32[2]{0}', space=sflag, size = 0x8, scoped, tag = 'scoped memory for tpu_custom_call.1']
    #allocation5 [shape = 'u8[65536]{0}', space=vmem, size = 0x10000, scoped, tag = 'input window, operand 1, single buffered']
    #allocation6 [shape = 's32[1]{0}', space=sflag, size = 0x4, scoped, tag = 'scoped memory for tpu_custom_call.1']
    #allocation7 [shape = 'u8[65536]{0}', space=vmem, size = 0x10000, scoped, tag = 'input window, operand 3, single buffered']
    #allocation8 [shape = 'u8[8192]{0}', space=vmem, size = 0x2000, scoped, tag = 'output window, operand 0']
    %10 = vsyncpa [#allocation3], 0
    %s11 = scalar_lea.sflag [#allocation3], 1
    %12 = vsyncpa %s11, 0
    %13 = vsyncpa [#allocation6], 0
    %14 = vsyncpa [#allocation4], 0
    %s15 = scalar_lea.sflag [#allocation4], 1
    %16 = vsyncpa %s15, 0
    loop: start=0, step=1, limit=4
    $region2: #{tpu_custom_call.1} parent=1 // loop_pre_header
      _
    $region3: #{tpu_custom_call.1} parent=1 // loop_header
      %s18 = sphi 0, %s22
      %p19 = scmp.ge.s32.totalorder %s18, 4
      %s28 = sphi 0, %s30
      %s31 = sphi 0, %s28
      %s32 = sphi 0, %s31
      %s48 = sphi 0, %s32
      %s52 = sphi 0, %s52
      %s54 = sphi 0, %s52
      %s55 = sphi 0, %s54
      %s69 = sphi 0, %s55
      %s73 = sphi 0, %s73
      %s75 = sphi 0, %s73
      %s76 = sphi 0, %s75
      %s90 = sphi 0, %s76
      %s94 = sphi 0, %s94
      %s96 = sphi 0, %s94
      %s97 = sphi 0, %s96
      %s111 = sphi 0, %s97
      %s115 = sphi 0, %s115
      %s117 = sphi 0, %s115
      %s118 = sphi 0, %s117
      %s132 = sphi 0, %s118
      %s138 = sphi 0, %s140
      %s141 = sphi 0, %s138
      %s142 = sphi 0, %s141
      %s158 = sphi 0, %s142
    $region4: #{tpu_custom_call.1} parent=1 // loop_header_branch
      %21 = sbr.rel (%p19) target = $region8
    $region5: #{tpu_custom_call.1} parent=1 // loop_body
      %s23 = ssub.s32 %s18, 1
      %s24 = ssub.s32 %s18, 2
      %s25 = sadd.s32 %s18, 1
      %s26 = ssub.s32 %s18, %s25
      %p27 = scmp.eq.s32.totalorder %s26, 0
      %s29 = sadd.s32 %s28, 1
      %s30 = scalar_select %p27, %s28, %s29
      %p33 = pneg %p27
      %p34 = scmp.eq.s32.totalorder %s18, 1
      %p35 = por %p33, %p34
      %p36 = scmp.ne.s32.totalorder %s28, %s31
      %p37 = scmp.eq.s32.totalorder %s18, 0
      %p38 = por %p36, %p37
      %p39 = scmp.ne.s32.totalorder %s28, %s31
      %p40 = scmp.eq.s32.totalorder %s23, 1
      %p41 = por %p39, %p40
      %p42 = scmp.ne.s32.totalorder %s31, %s32
      %p43 = scmp.eq.s32.totalorder %s23, 0
      %p44 = por %p42, %p43
      %p45 = scmp.ne.s32.totalorder %s31, %s32
      %p46 = scmp.eq.s32.totalorder %s24, 1
      %p47 = por %p45, %p46
      %p49 = scmp.ne.s32.totalorder %s32, %s48
      %p50 = scmp.eq.s32.totalorder %s24, 0
      %p51 = por %p49, %p50
      %s53 = sadd.s32 %s52, 1
      %p56 = scmp.eq.s32.totalorder %s18, 1
      %p57 = scmp.ne.s32.totalorder %s52, %s54
      %p58 = scmp.eq.s32.totalorder %s18, 0
      %p59 = por %p57, %p58
      %p60 = scmp.ne.s32.totalorder %s52, %s54
      %p61 = scmp.eq.s32.totalorder %s23, 1
      %p62 = por %p60, %p61
      %p63 = scmp.ne.s32.totalorder %s54, %s55
      %p64 = scmp.eq.s32.totalorder %s23, 0
      %p65 = por %p63, %p64
      %p66 = scmp.ne.s32.totalorder %s54, %s55
      %p67 = scmp.eq.s32.totalorder %s24, 1
      %p68 = por %p66, %p67
      %p70 = scmp.ne.s32.totalorder %s55, %s69
      %p71 = scmp.eq.s32.totalorder %s24, 0
      %p72 = por %p70, %p71
      %s74 = sadd.s32 %s73, 1
      %p77 = scmp.eq.s32.totalorder %s18, 1
      %p78 = scmp.ne.s32.totalorder %s73, %s75
      %p79 = scmp.eq.s32.totalorder %s18, 0
      %p80 = por %p78, %p79
      %p81 = scmp.ne.s32.totalorder %s73, %s75
      %p82 = scmp.eq.s32.totalorder %s23, 1
      %p83 = por %p81, %p82
      %p84 = scmp.ne.s32.totalorder %s75, %s76
      %p85 = scmp.eq.s32.totalorder %s23, 0
      %p86 = por %p84, %p85
      %p87 = scmp.ne.s32.totalorder %s75, %s76
      %p88 = scmp.eq.s32.totalorder %s24, 1
      %p89 = por %p87, %p88
      %p91 = scmp.ne.s32.totalorder %s76, %s90
      %p92 = scmp.eq.s32.totalorder %s24, 0
      %p93 = por %p91, %p92
      %s95 = sadd.s32 %s94, 1
      %p98 = scmp.eq.s32.totalorder %s18, 1
      %p99 = scmp.ne.s32.totalorder %s94, %s96
      %p100 = scmp.eq.s32.totalorder %s18, 0
      %p101 = por %p99, %p100
      %p102 = scmp.ne.s32.totalorder %s94, %s96
      %p103 = scmp.eq.s32.totalorder %s23, 1
      %p104 = por %p102, %p103
      %p105 = scmp.ne.s32.totalorder %s96, %s97
      %p106 = scmp.eq.s32.totalorder %s23, 0
      %p107 = por %p105, %p106
      %p108 = scmp.ne.s32.totalorder %s96, %s97
      %p109 = scmp.eq.s32.totalorder %s24, 1
      %p110 = por %p108, %p109
      %p112 = scmp.ne.s32.totalorder %s97, %s111
      %p113 = scmp.eq.s32.totalorder %s24, 0
      %p114 = por %p112, %p113
      %s116 = sadd.s32 %s115, 1
      %p119 = scmp.eq.s32.totalorder %s18, 1
      %p120 = scmp.ne.s32.totalorder %s115, %s117
      %p121 = scmp.eq.s32.totalorder %s18, 0
      %p122 = por %p120, %p121
      %p123 = scmp.ne.s32.totalorder %s115, %s117
      %p124 = scmp.eq.s32.totalorder %s23, 1
      %p125 = por %p123, %p124
      %p126 = scmp.ne.s32.totalorder %s117, %s118
      %p127 = scmp.eq.s32.totalorder %s23, 0
      %p128 = por %p126, %p127
      %p129 = scmp.ne.s32.totalorder %s117, %s118
      %p130 = scmp.eq.s32.totalorder %s24, 1
      %p131 = por %p129, %p130
      %p133 = scmp.ne.s32.totalorder %s118, %s132
      %p134 = scmp.eq.s32.totalorder %s24, 0
      %p135 = por %p133, %p134
      %s136 = ssub.s32 %s18, %s25
      %p137 = scmp.eq.s32.totalorder %s136, 0
      %s139 = sadd.s32 %s138, 1
      %s140 = scalar_select %p137, %s138, %s139
      %p143 = pneg %p137
      %p144 = scmp.eq.s32.totalorder %s18, 1
      %p145 = por %p143, %p144
      %p146 = scmp.ne.s32.totalorder %s138, %s141
      %p147 = scmp.eq.s32.totalorder %s18, 0
      %p148 = por %p146, %p147
      %p149 = scmp.ne.s32.totalorder %s138, %s141
      %p150 = scmp.eq.s32.totalorder %s23, 1
      %p151 = por %p149, %p150
      %p152 = scmp.ne.s32.totalorder %s141, %s142
      %p153 = scmp.eq.s32.totalorder %s23, 0
      %p154 = por %p152, %p153
      %p155 = scmp.ne.s32.totalorder %s141, %s142
      %p156 = scmp.eq.s32.totalorder %s24, 1
      %p157 = por %p155, %p156
      %p159 = scmp.ne.s32.totalorder %s142, %s158
      %p160 = scmp.eq.s32.totalorder %s24, 0
      %p161 = por %p159, %p160
      %p162 = scmp.le.s32.totalorder 1, %s18
      %p163 = scmp.lt.s32.totalorder %s18, 3
      %p164 = pnand %p162, %p163
      %p165 = pneg %p164
      // Predicated region
      $region9: #{tpu_custom_call.1} parent=5 // pred_check
        _
      $region10: #{tpu_custom_call.1} parent=5 // pred_check_branch
        %167 = sbr.rel (%p164) target = $region12
      $region11: #{tpu_custom_call.1} parent=5 // pred_region
        %s168 = ssub.s32 %s18, 1
        // Predicated region
        $region13: #{tpu_custom_call.1} parent=11 // pred_check
          %p169 = pneg %p65
        $region14: #{tpu_custom_call.1} parent=11 // pred_check_branch
          %171 = sbr.rel (%p169) target = $region16
        $region15: #{tpu_custom_call.1} parent=11 // pred_region
          %s173 = ssub.s32 2048, 2048
          %174 = vsyncadd [#allocation6], %s173
          %s175 = sshll.u32 [#allocation5], 4
          %s176 = int_to_ptr.vmem [resolvable:$true] %s175
          %181 = dma.hbm_to_vmem [thread:$0]  %s1, 2048, %s176, [#allocation6], 128, 128, 8
        $region16: #{tpu_custom_call.1} parent=11 // pred_fallthru
          _
        // Predicated region
        $region17: #{tpu_custom_call.1} parent=11 // pred_check
          %p182 = pneg %p86
        $region18: #{tpu_custom_call.1} parent=11 // pred_check_branch
          %184 = sbr.rel (%p182) target = $region20
        $region19: #{tpu_custom_call.1} parent=11 // pred_region
          _
        $region20: #{tpu_custom_call.1} parent=11 // pred_fallthru
          _
        // Predicated region
        $region21: #{tpu_custom_call.1} parent=11 // pred_check
          %p185 = pneg %p107
        $region22: #{tpu_custom_call.1} parent=11 // pred_check_branch
          %187 = sbr.rel (%p185) target = $region24
        $region23: #{tpu_custom_call.1} parent=11 // pred_region
          %s189 = ssub.s32 2048, 2048
          %190 = vsyncadd [#allocation6], %s189
          %s191 = sshll.u32 [#allocation7], 4
          %s192 = int_to_ptr.vmem [resolvable:$true] %s191
          %197 = dma.hbm_to_vmem [thread:$0]  %s3, 2048, %s192, [#allocation6], 128, 128, 8
        $region24: #{tpu_custom_call.1} parent=11 // pred_fallthru
          _
        // Predicated region
        $region25: #{tpu_custom_call.1} parent=11 // pred_check
          %p198 = pneg %p128
        $region26: #{tpu_custom_call.1} parent=11 // pred_check_branch
          %200 = sbr.rel (%p198) target = $region28
        $region27: #{tpu_custom_call.1} parent=11 // pred_region
          _
        $region28: #{tpu_custom_call.1} parent=11 // pred_fallthru
          _
      $region12: #{tpu_custom_call.1} parent=5 // pred_fallthru
        _
      %p201 = scmp.lt.s32.totalorder %s18, 2
      // Predicated region
      $region29: #{tpu_custom_call.1} parent=5 // pred_check
        %p202 = pneg %p201
      $region30: #{tpu_custom_call.1} parent=5 // pred_check_branch
        %204 = sbr.rel (%p202) target = $region32
      $region31: #{tpu_custom_call.1} parent=5 // pred_region
        // Predicated region
        $region33: #{tpu_custom_call.1} parent=31 // pred_check
          %p205 = pneg %p38
        $region34: #{tpu_custom_call.1} parent=31 // pred_check_branch
          %207 = sbr.rel (%p205) target = $region36
        $region35: #{tpu_custom_call.1} parent=31 // pred_region
          %s208 = sand.u32 %s28, 1
          %s209 = scalar_lea.sflag [#allocation3], %s208
          %s210 = sand.u32 %s28, 1
          %s211 = smul.addr %s210, 64
          %s212 = scalar_lea.vmem [#allocation2], %s211
          %s213 = smul.u32 8, %s18
          %s215 = ssub.s32 1024, 1024
          %216 = vsyncadd %s209, %s215
          %s217 = smul.addr %s213, 128
          %s218 = scalar_lea.hbm %s0, %s217
          %s219 = sshll.u32 %s212, 4
          %s220 = int_to_ptr.vmem [resolvable:$true] %s219
          %225 = dma.hbm_to_vmem [thread:$0]  %s218, 1024, %s220, %s209, 128, 128, 8
        $region36: #{tpu_custom_call.1} parent=31 // pred_fallthru
          _
      $region32: #{tpu_custom_call.1} parent=5 // pred_fallthru
        _
      %p226 = scmp.le.s32.totalorder 1, %s18
      %p227 = scmp.lt.s32.totalorder %s18, 3
      %p228 = pnand %p226, %p227
      %p229 = pneg %p228
      // Predicated region
      $region37: #{tpu_custom_call.1} parent=5 // pred_check
        _
      $region38: #{tpu_custom_call.1} parent=5 // pred_check_branch
        %231 = sbr.rel (%p228) target = $region40
      $region39: #{tpu_custom_call.1} parent=5 // pred_region
        %s232 = ssub.s32 %s18, 1
        %s233 = sand.u32 %s31, 1
        %s234 = scalar_lea.sflag [#allocation3], %s233
        %s235 = sand.u32 %s31, 1
        %s236 = smul.addr %s235, 64
        %s237 = scalar_lea.vmem [#allocation2], %s236
        // Predicated region
        $region41: #{tpu_custom_call.1} parent=39 // pred_check
          %p238 = pneg %p44
        $region42: #{tpu_custom_call.1} parent=39 // pred_check_branch
          %240 = sbr.rel (%p238) target = $region44
        $region43: #{tpu_custom_call.1} parent=39 // pred_region
          %241 = dma.done %s234, 1024
        $region44: #{tpu_custom_call.1} parent=39 // pred_fallthru
          _
        // Predicated region
        $region45: #{tpu_custom_call.1} parent=39 // pred_check
          %p242 = pneg %p65
        $region46: #{tpu_custom_call.1} parent=39 // pred_check_branch
          %244 = sbr.rel (%p242) target = $region48
        $region47: #{tpu_custom_call.1} parent=39 // pred_region
          %245 = dma.done [#allocation6], 2048
        $region48: #{tpu_custom_call.1} parent=39 // pred_fallthru
          _
        // Predicated region
        $region49: #{tpu_custom_call.1} parent=39 // pred_check
          %p246 = pneg %p107
        $region50: #{tpu_custom_call.1} parent=39 // pred_check_branch
          %248 = sbr.rel (%p246) target = $region52
        $region51: #{tpu_custom_call.1} parent=39 // pred_region
          %249 = dma.done [#allocation6], 2048
        $region52: #{tpu_custom_call.1} parent=39 // pred_fallthru
          _
        %s250 = sand.u32 %s31, 1
        %s251 = scalar_lea.sflag [#allocation3], %s250
        %s252 = sand.u32 %s31, 1
        %s253 = smul.addr %s252, 64
        %s254 = scalar_lea.vmem [#allocation2], %s253
        %p255 = pneg %p44
        %p256 = pneg %p41
        %p257 = pneg %p65
        %p258 = pneg %p62
        %p259 = pneg %p86
        %p260 = pneg %p83
        %p261 = pneg %p107
        %p262 = pneg %p104
        %p263 = pneg %p128
        %p264 = pneg %p125
        %p265 = pneg %p154
        %p266 = pneg %p151
        %s267 = sand.u32 %s141, 1
        %s268 = scalar_lea.sflag [#allocation4], %s267
        %s269 = sand.u32 %s141, 1
        %s270 = smul.addr %s269, 8
        %s271 = scalar_lea.vmem [#allocation8], %s270
        %s272 = smul.u32 8, %s23
        %v273 = vld [vmem:[%s237] sm:$0xff]
        %v274 = vld [vmem:[%s237 + $0x8] sm:$0xff]
        %v275 = vld [vmem:[%s237 + $0x10] sm:$0xff]
        %v276 = vld [vmem:[%s237 + $0x18] sm:$0xff]
        %v277 = vld [vmem:[%s237 + $0x20] sm:$0xff]
        %v278 = vld [vmem:[%s237 + $0x28] sm:$0xff]
        %v279 = vld [vmem:[%s237 + $0x30] sm:$0xff]
        %v280 = vld [vmem:[%s237 + $0x38] sm:$0xff]
        %v281 = vrot.slane %v273, 4
        %v282 = vadd.f32 %v273, %v281
        %v283 = vrot.slane %v282, 2
        %v284 = vadd.f32 %v282, %v283
        %v285 = vrot.slane %v284, 1
        %v286 = vadd.f32 %v284, %v285
        %v287 = vrot.slane %v274, 4
        %v288 = vadd.f32 %v274, %v287
        %v289 = vrot.slane %v288, 2
        %v290 = vadd.f32 %v288, %v289
        %v291 = vrot.slane %v290, 1
        %v292 = vadd.f32 %v290, %v291
        %v293 = vrot.slane %v275, 4
        %v294 = vadd.f32 %v275, %v293
        %v295 = vrot.slane %v294, 2
        %v296 = vadd.f32 %v294, %v295
        %v297 = vrot.slane %v296, 1
        %v298 = vadd.f32 %v296, %v297
        %v299 = vrot.slane %v276, 4
        %v300 = vadd.f32 %v276, %v299
        %v301 = vrot.slane %v300, 2
        %v302 = vadd.f32 %v300, %v301
        %v303 = vrot.slane %v302, 1
        %v304 = vadd.f32 %v302, %v303
        %v305 = vrot.slane %v277, 4
        %v306 = vadd.f32 %v277, %v305
        %v307 = vrot.slane %v306, 2
        %v308 = vadd.f32 %v306, %v307
        %v309 = vrot.slane %v308, 1
        %v310 = vadd.f32 %v308, %v309
        %v311 = vrot.slane %v278, 4
        %v312 = vadd.f32 %v278, %v311
        %v313 = vrot.slane %v312, 2
        %v314 = vadd.f32 %v312, %v313
        %v315 = vrot.slane %v314, 1
        %v316 = vadd.f32 %v314, %v315
        %v317 = vrot.slane %v279, 4
        %v318 = vadd.f32 %v279, %v317
        %v319 = vrot.slane %v318, 2
        %v320 = vadd.f32 %v318, %v319
        %v321 = vrot.slane %v320, 1
        %v322 = vadd.f32 %v320, %v321
        %v323 = vrot.slane %v280, 4
        %v324 = vadd.f32 %v280, %v323
        %v325 = vrot.slane %v324, 2
        %v326 = vadd.f32 %v324, %v325
        %v327 = vrot.slane %v326, 1
        %v328 = vadd.f32 %v326, %v327
        %v329 = vrcp.pop 8.0
        %v330 = vmul.f32 %v286, %v329
        %v331 = vmul.f32 %v292, %v329
        %v332 = vmul.f32 %v298, %v329
        %v333 = vmul.f32 %v304, %v329
        %v334 = vmul.f32 %v310, %v329
        %v335 = vmul.f32 %v316, %v329
        %v336 = vmul.f32 %v322, %v329
        %v337 = vmul.f32 %v328, %v329
        %v338 = vld [vmem:[#allocation5] sm:$0xff]
        %v339 = vld [vmem:[#allocation5 + $0x8] sm:$0xff]
        %v340 = vld [vmem:[#allocation5 + $0x10] sm:$0xff]
        %v341 = vld [vmem:[#allocation5 + $0x18] sm:$0xff]
        %v342 = vld [vmem:[#allocation5 + $0x20] sm:$0xff]
        %v343 = vld [vmem:[#allocation5 + $0x28] sm:$0xff]
        %v344 = vld [vmem:[#allocation5 + $0x30] sm:$0xff]
        %v345 = vld [vmem:[#allocation5 + $0x38] sm:$0xff]
        %v346 = vld [vmem:[#allocation5 + $0x40] sm:$0xff]
        %v347 = vld [vmem:[#allocation5 + $0x48] sm:$0xff]
        %v348 = vld [vmem:[#allocation5 + $0x50] sm:$0xff]
        %v349 = vld [vmem:[#allocation5 + $0x58] sm:$0xff]
        %v350 = vld [vmem:[#allocation5 + $0x60] sm:$0xff]
        %v351 = vld [vmem:[#allocation5 + $0x68] sm:$0xff]
        %v352 = vld [vmem:[#allocation5 + $0x70] sm:$0xff]
        %v353 = vld [vmem:[#allocation5 + $0x78] sm:$0xff]
        %v354 = vld [vmem:[%s2] sm:$0x1]
        %v356 = vlaneseq
        %v357 = vshrl.u32 %v356, 7
        %v358 = vsub.s32 0, %v357
        %v359 = vrot.slane %v354, %v358
        %vm369 = vcmask 1041409
        %v370 = vsel %vm369, %v331, %v330
        %vm371 = vcmask 1042434
        %v372 = vsel %vm371, %v332, %v370
        %vm373 = vcmask 1043459
        %v374 = vsel %vm373, %v333, %v372
        %vm375 = vcmask 1044484
        %v376 = vsel %vm375, %v334, %v374
        %vm377 = vcmask 1045509
        %v378 = vsel %vm377, %v335, %v376
        %vm379 = vcmask 1046534
        %v380 = vsel %vm379, %v336, %v378
        %vm381 = vcmask 1047559
        %v382 = vsel %vm381, %v337, %v380
        %384 = vmatprep.subr.mxu0 0.0
        %385 = vmatpush1.msra.mxu0 %v338
        %386 = vmatprep.subr.mxu0 0.0
        %387 = vmatpush1.msra.mxu0 %v339
        %388 = vmatprep.subr.mxu0 0.0
        %389 = vmatpush1.msra.mxu0 %v340
        %390 = vmatprep.subr.mxu0 0.0
        %391 = vmatpush1.msra.mxu0 %v341
        %392 = vmatprep.subr.mxu0 0.0
        %393 = vmatpush1.msra.mxu0 %v342
        %394 = vmatprep.subr.mxu0 0.0
        %395 = vmatpush1.msra.mxu0 %v343
        %396 = vmatprep.subr.mxu0 0.0
        %397 = vmatpush1.msra.mxu0 %v344
        %398 = vmatprep.subr.mxu0 0.0
        %399 = vmatpush1.msra.mxu0 %v345
        %400 = vmatprep.subr.mxu0 0.0
        %401 = vmatpush1.msra.mxu0 %v346
        %402 = vmatprep.subr.mxu0 0.0
        %403 = vmatpush1.msra.mxu0 %v347
        %404 = vmatprep.subr.mxu0 0.0
        %405 = vmatpush1.msra.mxu0 %v348
        %406 = vmatprep.subr.mxu0 0.0
        %407 = vmatpush1.msra.mxu0 %v349
        %408 = vmatprep.subr.mxu0 0.0
        %409 = vmatpush1.msra.mxu0 %v350
        %410 = vmatprep.subr.mxu0 0.0
        %411 = vmatpush1.msra.mxu0 %v351
        %412 = vmatprep.subr.mxu0 0.0
        %413 = vmatpush1.msra.mxu0 %v352
        %414 = vmatprep.subr.mxu0 0.0
        %415 = vmatpush1.msra.mxu0 %v353
        %416 = vmatprep.subr.mxu0 0.0
        %417 = vmatpush1.msra.mxu0 0.0
        %418 = vmatprep.subr.mxu0 0.0
        %419 = vmatpush1.msra.mxu0 0.0
        %420 = vmatprep.subr.mxu0 0.0
        %421 = vmatpush1.msra.mxu0 0.0
        %422 = vmatprep.subr.mxu0 0.0
        %423 = vmatpush1.msra.mxu0 0.0
        %424 = vmatprep.subr.mxu0 0.0
        %425 = vmatpush1.msra.mxu0 0.0
        %426 = vmatprep.subr.mxu0 0.0
        %427 = vmatpush1.msra.mxu0 0.0
        %428 = vmatprep.subr.mxu0 0.0
        %429 = vmatpush1.msra.mxu0 0.0
        %430 = vmatprep.subr.mxu0 0.0
        %431 = vmatpush1.msra.mxu0 0.0
        %432 = vmatprep.subr.mxu0 0.0
        %433 = vmatpush1.msra.mxu0 0.0
        %434 = vmatprep.subr.mxu0 0.0
        %435 = vmatpush1.msra.mxu0 0.0
        %436 = vmatprep.subr.mxu0 0.0
        %437 = vmatpush1.msra.mxu0 0.0
        %438 = vmatprep.subr.mxu0 0.0
        %439 = vmatpush1.msra.mxu0 0.0
        %440 = vmatprep.subr.mxu0 0.0
        %441 = vmatpush1.msra.mxu0 0.0
        %442 = vmatprep.subr.mxu0 0.0
        %443 = vmatpush1.msra.mxu0 0.0
        %444 = vmatprep.subr.mxu0 0.0
        %445 = vmatpush1.msra.mxu0 0.0
        %446 = vmatprep.subr.mxu0 0.0
        %447 = vmatpush1.msra.mxu0 0.0
        %448 = vmatprep.mubr.f32.mxu0 0.0
        %449 = vmatmul.mubr.f32.gmra.mrb[0].mxu0 %v382
        %v450 = vpop.f32.mrb[0].mxu0
        %v451 = vadd.f32 %v359, %v450
        %v452 = vpop.f32.mrb[0].mxu0
        %453 = vdwg.mxu0
        %v454 = vmax.f32 %v451, 0.0
        %v455 = vld [vmem:[#allocation7] sm:$0xff]
        %v456 = vld [vmem:[#allocation7 + $0x8] sm:$0xff]
        %v457 = vld [vmem:[#allocation7 + $0x10] sm:$0xff]
        %v458 = vld [vmem:[#allocation7 + $0x18] sm:$0xff]
        %v459 = vld [vmem:[#allocation7 + $0x20] sm:$0xff]
        %v460 = vld [vmem:[#allocation7 + $0x28] sm:$0xff]
        %v461 = vld [vmem:[#allocation7 + $0x30] sm:$0xff]
        %v462 = vld [vmem:[#allocation7 + $0x38] sm:$0xff]
        %v463 = vld [vmem:[#allocation7 + $0x40] sm:$0xff]
        %v464 = vld [vmem:[#allocation7 + $0x48] sm:$0xff]
        %v465 = vld [vmem:[#allocation7 + $0x50] sm:$0xff]
        %v466 = vld [vmem:[#allocation7 + $0x58] sm:$0xff]
        %v467 = vld [vmem:[#allocation7 + $0x60] sm:$0xff]
        %v468 = vld [vmem:[#allocation7 + $0x68] sm:$0xff]
        %v469 = vld [vmem:[#allocation7 + $0x70] sm:$0xff]
        %v470 = vld [vmem:[#allocation7 + $0x78] sm:$0xff]
        %v471 = vld [vmem:[%s4] sm:$0x1]
        %v473 = vlaneseq
        %v474 = vshrl.u32 %v473, 7
        %v475 = vsub.s32 0, %v474
        %v476 = vrot.slane %v471, %v475
        %478 = vmatprep.subr.mxu0 0.0
        %479 = vmatpush1.msra.mxu0 %v455
        %480 = vmatprep.subr.mxu0 0.0
        %481 = vmatpush1.msra.mxu0 %v456
        %482 = vmatprep.subr.mxu0 0.0
        %483 = vmatpush1.msra.mxu0 %v457
        %484 = vmatprep.subr.mxu0 0.0
        %485 = vmatpush1.msra.mxu0 %v458
        %486 = vmatprep.subr.mxu0 0.0
        %487 = vmatpush1.msra.mxu0 %v459
        %488 = vmatprep.subr.mxu0 0.0
        %489 = vmatpush1.msra.mxu0 %v460
        %490 = vmatprep.subr.mxu0 0.0
        %491 = vmatpush1.msra.mxu0 %v461
        %492 = vmatprep.subr.mxu0 0.0
        %493 = vmatpush1.msra.mxu0 %v462
        %494 = vmatprep.subr.mxu0 0.0
        %495 = vmatpush1.msra.mxu0 %v463
        %496 = vmatprep.subr.mxu0 0.0
        %497 = vmatpush1.msra.mxu0 %v464
        %498 = vmatprep.subr.mxu0 0.0
        %499 = vmatpush1.msra.mxu0 %v465
        %500 = vmatprep.subr.mxu0 0.0
        %501 = vmatpush1.msra.mxu0 %v466
        %502 = vmatprep.subr.mxu0 0.0
        %503 = vmatpush1.msra.mxu0 %v467
        %504 = vmatprep.subr.mxu0 0.0
        %505 = vmatpush1.msra.mxu0 %v468
        %506 = vmatprep.subr.mxu0 0.0
        %507 = vmatpush1.msra.mxu0 %v469
        %508 = vmatprep.subr.mxu0 0.0
        %509 = vmatpush1.msra.mxu0 %v470
        %510 = vmatprep.subr.mxu0 0.0
        %511 = vmatpush1.msra.mxu0 0.0
        %512 = vmatprep.subr.mxu0 0.0
        %513 = vmatpush1.msra.mxu0 0.0
        %514 = vmatprep.subr.mxu0 0.0
        %515 = vmatpush1.msra.mxu0 0.0
        %516 = vmatprep.subr.mxu0 0.0
        %517 = vmatpush1.msra.mxu0 0.0
        %518 = vmatprep.subr.mxu0 0.0
        %519 = vmatpush1.msra.mxu0 0.0
        %520 = vmatprep.subr.mxu0 0.0
        %521 = vmatpush1.msra.mxu0 0.0
        %522 = vmatprep.subr.mxu0 0.0
        %523 = vmatpush1.msra.mxu0 0.0
        %524 = vmatprep.subr.mxu0 0.0
        %525 = vmatpush1.msra.mxu0 0.0
        %526 = vmatprep.subr.mxu0 0.0
        %527 = vmatpush1.msra.mxu0 0.0
        %528 = vmatprep.subr.mxu0 0.0
        %529 = vmatpush1.msra.mxu0 0.0
        %530 = vmatprep.subr.mxu0 0.0
        %531 = vmatpush1.msra.mxu0 0.0
        %532 = vmatprep.subr.mxu0 0.0
        %533 = vmatpush1.msra.mxu0 0.0
        %534 = vmatprep.subr.mxu0 0.0
        %535 = vmatpush1.msra.mxu0 0.0
        %536 = vmatprep.subr.mxu0 0.0
        %537 = vmatpush1.msra.mxu0 0.0
        %538 = vmatprep.subr.mxu0 0.0
        %539 = vmatpush1.msra.mxu0 0.0
        %540 = vmatprep.subr.mxu0 0.0
        %541 = vmatpush1.msra.mxu0 0.0
        %542 = vmatprep.mubr.f32.mxu0 0.0
        %543 = vmatmul.mubr.f32.gmra.mrb[0].mxu0 %v454
        %v544 = vpop.f32.mrb[0].mxu0
        %v545 = vadd.f32 %v476, %v544
        %v546 = vpop.f32.mrb[0].mxu0
        %547 = vdwg.mxu0
        %548 = vst [vmem:[%s271] sm:$0xff] %v545
        %s549 = sand.u32 %s141, 1
        %s550 = scalar_lea.sflag [#allocation4], %s549
        %s551 = sand.u32 %s141, 1
        %s552 = smul.addr %s551, 8
        %s553 = scalar_lea.vmem [#allocation8], %s552
        // Predicated region
        $region53: #{tpu_custom_call.1} parent=39 // pred_check
          %p554 = pneg %p151
        $region54: #{tpu_custom_call.1} parent=39 // pred_check_branch
          %556 = sbr.rel (%p554) target = $region56
        $region55: #{tpu_custom_call.1} parent=39 // pred_region
          %s558 = ssub.s32 128, 128
          %559 = vsyncadd %s550, %s558
          %s560 = smul.addr %s23, 128
          %s561 = scalar_lea.hbm %s5, %s560
          %s563 = sshll.u32 %s553, 4
          %s564 = int_to_ptr.vmem [resolvable:$true] %s563
          %566 = dma.vmem_to_hbm [thread:$0]  %s564, 128, %s561, %s550
        $region56: #{tpu_custom_call.1} parent=39 // pred_fallthru
          _
      $region40: #{tpu_custom_call.1} parent=5 // pred_fallthru
        _
      %p567 = scmp.le.s32.totalorder 2, %s18
      // Predicated region
      $region57: #{tpu_custom_call.1} parent=5 // pred_check
        %p568 = pneg %p567
      $region58: #{tpu_custom_call.1} parent=5 // pred_check_branch
        %570 = sbr.rel (%p568) target = $region60
      $region59: #{tpu_custom_call.1} parent=5 // pred_region
        %s571 = ssub.s32 %s18, 2
        // Predicated region
        $region61: #{tpu_custom_call.1} parent=59 // pred_check
          %p572 = pneg %p157
        $region62: #{tpu_custom_call.1} parent=59 // pred_check_branch
          %574 = sbr.rel (%p572) target = $region64
        $region63: #{tpu_custom_call.1} parent=59 // pred_region
          %s575 = sand.u32 %s142, 1
          %s576 = scalar_lea.sflag [#allocation4], %s575
          %s577 = sand.u32 %s142, 1
          %s578 = smul.addr %s577, 8
          %s579 = scalar_lea.vmem [#allocation8], %s578
          %580 = dma.done %s576, 128
        $region64: #{tpu_custom_call.1} parent=59 // pred_fallthru
          _
      $region60: #{tpu_custom_call.1} parent=5 // pred_fallthru
        _
    $region6: #{tpu_custom_call.1} parent=1 // loop_footer
      %s22 = sadd.s32 1, %s18
    $region7: #{tpu_custom_call.1} parent=1 // loop_footer_branch
      %17 = sbr.rel target = $region3
    $region8: #{tpu_custom_call.1} parent=1 // loop_exit
      _
    %581 = vsyncpa [#allocation3], 1
    %s582 = scalar_lea.sflag [#allocation3], 1
    %583 = vsyncpa %s582, 1
    %584 = vsyncpa [#allocation6], 1
    %585 = vsyncpa [#allocation4], 1
    %s586 = scalar_lea.sflag [#allocation4], 1
    %587 = vsyncpa %s586, 1

</llo_original>
